<compile_context>
chip_gen: v6e
topology: v6e:2x2x1
jax: 0.10.0
libtpu: 0.0.40
codegen_flags: <defaults>
</compile_context>

<pallas_src>
import jax
import jax.numpy as jnp
from jax.experimental import pallas as pl
from jax.experimental.pallas import tpu as pltpu

_EPS = 1e-12


def _round_up(x, m):
    return ((x + m - 1) // m) * m


def _make_kernel(B, tile_b, needs_mask):
    def kernel(pred_ref, label_ref, out_ref):
        eps = jnp.float32(_EPS)
        log_eps = jnp.log(eps)

        # ---- label branch (only t_prob / log_t stay live afterwards) ----
        t = label_ref[...].astype(jnp.float32)
        t_shift = t - jnp.max(t, axis=-1, keepdims=True)
        t_exp = jnp.exp(t_shift)
        t_sum = jnp.sum(t_exp, axis=-1, keepdims=True)
        t_prob = jnp.maximum(t_exp * (1.0 / t_sum), eps)
        log_t = jnp.maximum(t_shift - jnp.log(t_sum), log_eps)

        # ---- pred branch ----
        p = pred_ref[...].astype(jnp.float32)
        p_shift = p - jnp.max(p, axis=-1, keepdims=True)
        p_exp = jnp.exp(p_shift)
        p_sum = jnp.sum(p_exp, axis=-1, keepdims=True)
        p_prob = jnp.maximum(p_exp * (1.0 / p_sum), eps)
        log_p = jnp.maximum(p_shift - jnp.log(p_sum), log_eps)

        # Fused symmetric KL: t*(lt-lp) + p*(lp-lt) == (t - p) * (lt - lp)
        term = (t_prob - p_prob) * (log_t - log_p)          # (tile_b, C)

        if needs_mask:
            # Ragged last tile: zero contributions from rows >= B.
            rows = (pl.program_id(0) * tile_b
                    + jax.lax.broadcasted_iota(jnp.int32, (tile_b, 1), 0))
            term = jnp.where(rows < B, term, 0.0)

        # Fold batch rows onto the 8 sublanes (layout-preserving split of the
        # leading axis -> pure-VPU adds, no per-step cross-lane XLU reduce).
        C = term.shape[-1]
        partial = jnp.sum(term.reshape(tile_b // 8, 8, C), axis=0)   # (8, C)
        out_ref[...] = partial[None, :, :]

    return kernel


def kldiv_loss_pallas(pred, label, *, max_tile_b=512,
                      vmem_budget_bytes=24 * 1024 * 1024):
    B, C = pred.shape
    assert label.shape == (B, C)

    itemsize = jnp.dtype(pred.dtype).itemsize

    # Largest batch tile (multiple of 8, <= max_tile_b, <= round_up(B, 8)) that
    # fits the VMEM budget: 2 inputs x 2 pipeline buffers + ~10 live f32 temps.
    per_row_bytes = C * (2 * 2 * itemsize + 10 * 4)
    tile_b = max(8, min(max_tile_b, vmem_budget_bytes // max(per_row_bytes, 1)))
    tile_b = min(tile_b, _round_up(B, 8))
    tile_b = max(8, (tile_b // 8) * 8)

    num_tiles = pl.cdiv(B, tile_b)
    needs_mask = (B % tile_b) != 0

    # Derive the VMEM limit from the actual footprint (headroom included),
    # capped at 48 MiB (safe on v7x's 64 MiB physical VMEM).
    in_bytes = 2 * 2 * tile_b * C * itemsize
    out_bytes = 2 * 8 * C * 4
    temp_bytes = 10 * tile_b * C * 4
    needed = in_bytes + out_bytes + temp_bytes
    vmem_limit = int(min(max(int(needed * 1.5) + (2 << 20), 32 << 20), 48 << 20))

    cost = pl.CostEstimate(
        flops=17 * B * C,
        transcendentals=2 * B * C + 4 * B,
        bytes_accessed=2 * B * C * itemsize + num_tiles * 8 * C * 4,
    )

    kernel = _make_kernel(B, tile_b, needs_mask)
    in_spec = pl.BlockSpec((tile_b, C), lambda i: (i, 0))

    partials = pl.pallas_call(
        kernel,
        out_shape=jax.ShapeDtypeStruct((num_tiles, 8, C), jnp.float32),
        grid_spec=pltpu.PrefetchScalarGridSpec(
            num_scalar_prefetch=0,
            grid=(num_tiles,),
            in_specs=[in_spec, in_spec],
            out_specs=pl.BlockSpec((1, 8, C), lambda i: (i, 0, 0)),
        ),
        compiler_params=pltpu.CompilerParams(
            dimension_semantics=("parallel",),
            vmem_limit_bytes=vmem_limit,
        ),
        cost_estimate=cost,
    )(pred, label)

    # Single tiny cross-lane / cross-tile reduce + normalization (in XLA).
    # (loss1/B + loss2/B) / 2  ==  total / (2 * B)
    return jnp.sum(partials) / jnp.float32(2 * B)


def kldiv_loss_ref(pred, label):
    pred = pred.astype(jnp.float32)
    label = label.astype(jnp.float32)
    predict = jax.nn.softmax(pred, axis=1)
    target = jax.nn.softmax(label, axis=1)
    predict = jnp.maximum(predict, 1e-12)
    target = jnp.maximum(target, 1e-12)
    B = pred.shape[0]
    loss1 = jnp.sum(target * (jnp.log(target) - jnp.log(predict))) / B
    loss2 = jnp.sum(predict * (jnp.log(predict) - jnp.log(target))) / B
    return (loss1 + loss2) / 2


if __name__ == "__main__":
    key = jax.random.PRNGKey(0)
    k1, k2, k3, k4, k5, k6 = jax.random.split(key, 6)

    # Small logit matrix consistent with the module: batch=16, channels=32.
    B, C = 16, 32
    pred = jax.random.normal(k1, (B, C), dtype=jnp.float32)
    label = jax.random.normal(k2, (B, C), dtype=jnp.float32)
    loss = jax.block_until_ready(kldiv_loss_pallas(pred, label))
    ref = jax.block_until_ready(kldiv_loss_ref(pred, label))
    assert jnp.allclose(loss, ref, rtol=1e-5, atol=1e-6), (loss, ref)

    # Non-aligned batch/channels, multiple tiles, ragged last tile (in-kernel mask).
    B2, C2 = 130, 72
    pred2 = jax.random.normal(k3, (B2, C2), dtype=jnp.float32)
    label2 = jax.random.normal(k4, (B2, C2), dtype=jnp.float32)
    loss2 = jax.block_until_ready(kldiv_loss_pallas(pred2, label2, max_tile_b=64))
    ref2 = jax.block_until_ready(kldiv_loss_ref(pred2, label2))
    assert jnp.allclose(loss2, ref2, rtol=1e-5, atol=1e-5), (loss2, ref2)

    # bf16 logits read directly (no wrapper upcast -> half the HBM read bytes).
    B3, C3 = 64, 100
    pred3 = jax.random.normal(k5, (B3, C3), dtype=jnp.bfloat16)
    label3 = jax.random.normal(k6, (B3, C3), dtype=jnp.bfloat16)
    loss3 = jax.block_until_ready(kldiv_loss_pallas(pred3, label3))
    ref3 = jax.block_until_ready(kldiv_loss_ref(pred3, label3))
    assert jnp.allclose(loss3, ref3, rtol=1e-4, atol=1e-4), (loss3, ref3)

    print("KERNEL_OK")
</pallas_src>

<mosaic_0001>
module attributes {stable_mosaic.version = 11 : i64} {
  func.func @kernel(%arg0: i32, %arg1: memref<16x32xf32, #tpu.memory_space<vmem>>, %arg2: memref<16x32xf32, #tpu.memory_space<vmem>>, %arg3: memref<1x8x32xf32, #tpu.memory_space<vmem>>) attributes {dimension_semantics = [#tpu.dimension_semantics<parallel>], iteration_bounds = array<i64: 1>, scalar_prefetch = 0 : i64, scratch_operands = 0 : i64, tpu.core_type = #tpu.core_type<tc>, window_params = [{transform_indices = @transform_0, window_bounds = array<i64: 16, 32>}, {transform_indices = @transform_1, window_bounds = array<i64: 16, 32>}, {transform_indices = @transform_2, window_bounds = array<i64: 1, 8, 32>}]} {
    %cst = arith.constant 9.99999996E-13 : f32
    %0 = math.log %cst : f32
    %c0 = arith.constant 0 : index
    %c0_0 = arith.constant 0 : index
    %1 = vector.load %arg2[%c0, %c0_0] : memref<16x32xf32, #tpu.memory_space<vmem>>, vector<16x32xf32>
    %cst_1 = arith.constant dense<0xFF800000> : vector<16xf32>
    %2 = vector.multi_reduction <maximumf>, %1, %cst_1 [1] : vector<16x32xf32> to vector<16xf32>
    %3 = vector.shape_cast %2 : vector<16xf32> to vector<16x1xf32>
    %4 = vector.broadcast %3 : vector<16x1xf32> to vector<16x32xf32>
    %5 = arith.subf %1, %4 : vector<16x32xf32>
    %6 = math.exp %5 : vector<16x32xf32>
    %cst_2 = arith.constant dense<0.000000e+00> : vector<16xf32>
    %7 = vector.multi_reduction <add>, %6, %cst_2 [1] : vector<16x32xf32> to vector<16xf32>
    %8 = vector.shape_cast %7 : vector<16xf32> to vector<16x1xf32>
    %cst_3 = arith.constant 1.000000e+00 : f32
    %9 = vector.broadcast %cst_3 : f32 to vector<16x1xf32>
    %10 = arith.divf %9, %8 : vector<16x1xf32>
    %11 = vector.broadcast %10 : vector<16x1xf32> to vector<16x32xf32>
    %12 = arith.mulf %6, %11 : vector<16x32xf32>
    %cst_4 = arith.constant 9.99999996E-13 : f32
    %13 = vector.broadcast %cst_4 : f32 to vector<16x32xf32>
    %14 = arith.maximumf %12, %13 : vector<16x32xf32>
    %15 = math.log %8 : vector<16x1xf32>
    %16 = vector.broadcast %15 : vector<16x1xf32> to vector<16x32xf32>
    %17 = arith.subf %5, %16 : vector<16x32xf32>
    %18 = vector.broadcast %0 : f32 to vector<16x32xf32>
    %19 = arith.maximumf %17, %18 : vector<16x32xf32>
    %c0_5 = arith.constant 0 : index
    %c0_6 = arith.constant 0 : index
    %20 = vector.load %arg1[%c0_5, %c0_6] : memref<16x32xf32, #tpu.memory_space<vmem>>, vector<16x32xf32>
    %cst_7 = arith.constant dense<0xFF800000> : vector<16xf32>
    %21 = vector.multi_reduction <maximumf>, %20, %cst_7 [1] : vector<16x32xf32> to vector<16xf32>
    %22 = vector.shape_cast %21 : vector<16xf32> to vector<16x1xf32>
    %23 = vector.broadcast %22 : vector<16x1xf32> to vector<16x32xf32>
    %24 = arith.subf %20, %23 : vector<16x32xf32>
    %25 = math.exp %24 : vector<16x32xf32>
    %cst_8 = arith.constant dense<0.000000e+00> : vector<16xf32>
    %26 = vector.multi_reduction <add>, %25, %cst_8 [1] : vector<16x32xf32> to vector<16xf32>
    %27 = vector.shape_cast %26 : vector<16xf32> to vector<16x1xf32>
    %cst_9 = arith.constant 1.000000e+00 : f32
    %28 = vector.broadcast %cst_9 : f32 to vector<16x1xf32>
    %29 = arith.divf %28, %27 : vector<16x1xf32>
    %30 = vector.broadcast %29 : vector<16x1xf32> to vector<16x32xf32>
    %31 = arith.mulf %25, %30 : vector<16x32xf32>
    %cst_10 = arith.constant 9.99999996E-13 : f32
    %32 = vector.broadcast %cst_10 : f32 to vector<16x32xf32>
    %33 = arith.maximumf %31, %32 : vector<16x32xf32>
    %34 = math.log %27 : vector<16x1xf32>
    %35 = vector.broadcast %34 : vector<16x1xf32> to vector<16x32xf32>
    %36 = arith.subf %24, %35 : vector<16x32xf32>
    %37 = vector.broadcast %0 : f32 to vector<16x32xf32>
    %38 = arith.maximumf %36, %37 : vector<16x32xf32>
    %39 = arith.subf %14, %33 : vector<16x32xf32>
    %40 = arith.subf %19, %38 : vector<16x32xf32>
    %41 = arith.mulf %39, %40 : vector<16x32xf32>
    %42 = vector.shape_cast %41 : vector<16x32xf32> to vector<2x8x32xf32>
    %cst_11 = arith.constant dense<0.000000e+00> : vector<8x32xf32>
    %43 = vector.multi_reduction <add>, %42, %cst_11 [0] : vector<2x8x32xf32> to vector<8x32xf32>
    %44 = vector.shape_cast %43 : vector<8x32xf32> to vector<1x8x32xf32>
    %c0_12 = arith.constant 0 : index
    %c0_13 = arith.constant 0 : index
    %c0_14 = arith.constant 0 : index
    %45 = vector.load %arg3[%c0_12, %c0_13, %c0_14] : memref<1x8x32xf32, #tpu.memory_space<vmem>>, vector<1x8x32xf32>
    tpu.vector_store %arg3[%c0_12, %c0_13, %c0_14], %44 {strides = array<i32>} : memref<1x8x32xf32, #tpu.memory_space<vmem>>, vector<1x8x32xf32>,
    return
  }
  func.func @transform_0(%arg0: i32) -> (i32, i32) {
    %c0_i32 = arith.constant 0 : i32
    %c0_i32_0 = arith.constant 0 : i32
    return %arg0, %c0_i32 : i32, i32
  }
  func.func @transform_1(%arg0: i32) -> (i32, i32) {
    %c0_i32 = arith.constant 0 : i32
    %c0_i32_0 = arith.constant 0 : i32
    return %arg0, %c0_i32 : i32, i32
  }
  func.func @transform_2(%arg0: i32) -> (i32, i32, i32) {
    %c0_i32 = arith.constant 0 : i32
    %c0_i32_0 = arith.constant 0 : i32
    %c0_i32_1 = arith.constant 0 : i32
    return %arg0, %c0_i32, %c0_i32_0 : i32, i32, i32
  }
}

</mosaic_0001>

<llo_original>
// kernel: tpu_custom_call.1
$region0: #{tpu_custom_call.1}
  #allocation0 [shape = 'u32[]', space=smem, size = 0x4, offset = 0x4, fixed_abs, tag = 'smem constant byte address 0x4 - core index']
  #allocation1 [shape = 'u32[144,128]{1,0:T(1,128)}', space=vmem, size = 0x12000, scoped, tag = 'internal scratch']
  %s0 = inlined_call_operand.hbm [shape: f32[16,32], index: 0, kind: input, shape index: {}]
  %s1 = inlined_call_operand.hbm [shape: f32[16,32], index: 1, kind: input, shape index: {}]
  %s2 = inlined_call_operand.hbm [shape: f32[1,8,32], index: 2, kind: output, shape index: {}]
  %s3 = sld [smem:[#allocation0]]
  $region26: #{tpu_custom_call.1} parent=0
    _
  %s5 = ssub.s32 1, %s3
  %s6 = scalar_select 0, %s5, %s3
  $region1: #{tpu_custom_call.1} parent=0
    #allocation2 [shape = 'u8[8192]{0}', space=vmem, size = 0x2000, scoped, tag = 'input window, operand 0, single buffered']
    #allocation3 [shape = 's32[1]{0}', space=sflag, size = 0x4, scoped, tag = 'scoped memory for tpu_custom_call.1']
    #allocation4 [shape = 's32[1]{0}', space=sflag, size = 0x4, scoped, tag = 'scoped memory for tpu_custom_call.1']
    #allocation5 [shape = 'u8[8192]{0}', space=vmem, size = 0x2000, scoped, tag = 'input window, operand 1, single buffered']
    #allocation6 [shape = 's32[1]{0}', space=sflag, size = 0x4, scoped, tag = 'scoped memory for tpu_custom_call.1']
    #allocation7 [shape = 'u8[4096]{0}', space=vmem, size = 0x1000, scoped, tag = 'output window, operand 0, single buffered']
    %7 = vsyncpa [#allocation3], 0
    %8 = vsyncpa [#allocation6], 0
    %9 = vsyncpa [#allocation4], 0
    // Predicated region
    $region2: #{tpu_custom_call.1} parent=1 // pred_check
      _
    $region3: #{tpu_custom_call.1} parent=1 // pred_check_branch
      %11 = sbr.rel (0) target = $region5
    $region4: #{tpu_custom_call.1} parent=1 // pred_region
      %s13 = ssub.s32 256, 256
      %14 = vsyncadd [#allocation3], %s13
      %s15 = sshll.u32 [#allocation2], 4
      %s16 = int_to_ptr.vmem [resolvable:$true] %s15
      %21 = dma.hbm_to_vmem [thread:$0]  %s0, 256, %s16, [#allocation3], 128, 128, 8
    $region5: #{tpu_custom_call.1} parent=1 // pred_fallthru
      _
    // Predicated region
    $region6: #{tpu_custom_call.1} parent=1 // pred_check
      _
    $region7: #{tpu_custom_call.1} parent=1 // pred_check_branch
      %23 = sbr.rel (0) target = $region9
    $region8: #{tpu_custom_call.1} parent=1 // pred_region
      %s25 = ssub.s32 256, 256
      %26 = vsyncadd [#allocation6], %s25
      %s27 = sshll.u32 [#allocation5], 4
      %s28 = int_to_ptr.vmem [resolvable:$true] %s27
      %33 = dma.hbm_to_vmem [thread:$0]  %s1, 256, %s28, [#allocation6], 128, 128, 8
    $region9: #{tpu_custom_call.1} parent=1 // pred_fallthru
      _
    // Predicated region
    $region10: #{tpu_custom_call.1} parent=1 // pred_check
      _
    $region11: #{tpu_custom_call.1} parent=1 // pred_check_branch
      %35 = sbr.rel (0) target = $region13
    $region12: #{tpu_custom_call.1} parent=1 // pred_region
      %36 = dma.done [#allocation3], 256
    $region13: #{tpu_custom_call.1} parent=1 // pred_fallthru
      _
    // Predicated region
    $region14: #{tpu_custom_call.1} parent=1 // pred_check
      _
    $region15: #{tpu_custom_call.1} parent=1 // pred_check_branch
      %38 = sbr.rel (0) target = $region17
    $region16: #{tpu_custom_call.1} parent=1 // pred_region
      %39 = dma.done [#allocation6], 256
    $region17: #{tpu_custom_call.1} parent=1 // pred_fallthru
      _
    %v40 = vld [vmem:[#allocation5] sm:$0xff]
    %v41 = vld [vmem:[#allocation5 + $0x8] sm:$0xff]
    %vm42 = vcmask 261120
    %v43 = vsel %vm42, %v40, -inf
    %44 = vmax.xlane.f32.xlu0 %v43
    %v45 = vpop.xlane.xlu0 %44
    %v46 = vsel %vm42, %v41, -inf
    %47 = vmax.xlane.f32.xlu0 %v46
    %v48 = vpop.xlane.xlu0 %47
    %v49 = vsub.f32 %v40, %v45
    %v50 = vsub.f32 %v41, %v48
    %v51 = vmul.f32 %v49, 1.442695
    %v52 = vpow.pop %v51
    %v53 = vmul.f32 %v50, 1.442695
    %v54 = vpow.pop %v53
    %v55 = vsel %vm42, %v52, 0.0
    %56 = vadd.xlane.f32.xlu0 %v55
    %v57 = vpop.xlane.xlu0 %56
    %v58 = vsel %vm42, %v54, 0.0
    %59 = vadd.xlane.f32.xlu0 %v58
    %v60 = vpop.xlane.xlu0 %59
    %v61 = vrcp.pop %v57
    %v62 = vmul.f32 1.0, %v61
    %v63 = vrcp.pop %v60
    %v64 = vmul.f32 1.0, %v63
    %v65 = vmul.f32 %v52, %v62
    %v66 = vmul.f32 %v54, %v64
    %v67 = vmax.f32 %v65, 1e-12
    %v68 = vmax.f32 %v66, 1e-12
    %v69 = vlog2.pop %v57
    %v70 = vmul.f32 %v69, 0.6931472
    %v71 = vlog2.pop %v60
    %v72 = vmul.f32 %v71, 0.6931472
    %v73 = vsub.f32 %v49, %v70
    %v74 = vsub.f32 %v50, %v72
    %v75 = vmax.f32 %v73, -27.631021
    %v76 = vmax.f32 %v74, -27.631021
    %v77 = vld [vmem:[#allocation2] sm:$0xff]
    %v78 = vld [vmem:[#allocation2 + $0x8] sm:$0xff]
    %v79 = vsel %vm42, %v77, -inf
    %80 = vmax.xlane.f32.xlu0 %v79
    %v81 = vpop.xlane.xlu0 %80
    %v82 = vsel %vm42, %v78, -inf
    %83 = vmax.xlane.f32.xlu0 %v82
    %v84 = vpop.xlane.xlu0 %83
    %v85 = vsub.f32 %v77, %v81
    %v86 = vsub.f32 %v78, %v84
    %v87 = vmul.f32 %v85, 1.442695
    %v88 = vpow.pop %v87
    %v89 = vmul.f32 %v86, 1.442695
    %v90 = vpow.pop %v89
    %v91 = vsel %vm42, %v88, 0.0
    %92 = vadd.xlane.f32.xlu0 %v91
    %v93 = vpop.xlane.xlu0 %92
    %v94 = vsel %vm42, %v90, 0.0
    %95 = vadd.xlane.f32.xlu0 %v94
    %v96 = vpop.xlane.xlu0 %95
    %v97 = vrcp.pop %v93
    %v98 = vmul.f32 1.0, %v97
    %v99 = vrcp.pop %v96
    %v100 = vmul.f32 1.0, %v99
    %v101 = vmul.f32 %v88, %v98
    %v102 = vmul.f32 %v90, %v100
    %v103 = vmax.f32 %v101, 1e-12
    %v104 = vmax.f32 %v102, 1e-12
    %v105 = vlog2.pop %v93
    %v106 = vmul.f32 %v105, 0.6931472
    %v107 = vlog2.pop %v96
    %v108 = vmul.f32 %v107, 0.6931472
    %v109 = vsub.f32 %v85, %v106
    %v110 = vsub.f32 %v86, %v108
    %v111 = vmax.f32 %v109, -27.631021
    %v112 = vmax.f32 %v110, -27.631021
    %v113 = vsub.f32 %v67, %v103
    %v114 = vsub.f32 %v68, %v104
    %v115 = vsub.f32 %v75, %v111
    %v116 = vsub.f32 %v76, %v112
    %v117 = vmul.f32 %v113, %v115
    %v118 = vmul.f32 %v114, %v116
    %v119 = vsel %vm42, %v117, 0.0
    %v120 = vsel %vm42, %v118, 0.0
    %v121 = vadd.f32 %v119, %v120
    %122 = vst.msk [vmem:[#allocation7] sm:$0xff] %vm42, %v121
    // Predicated region
    $region18: #{tpu_custom_call.1} parent=1 // pred_check
      _
    $region19: #{tpu_custom_call.1} parent=1 // pred_check_branch
      %124 = sbr.rel (0) target = $region21
    $region20: #{tpu_custom_call.1} parent=1 // pred_region
      %s126 = ssub.s32 128, 128
      %127 = vsyncadd [#allocation4], %s126
      %s129 = sshll.u32 [#allocation7], 4
      %s130 = int_to_ptr.vmem [resolvable:$true] %s129
      %132 = dma.vmem_to_hbm [thread:$0]  %s130, 128, %s2, [#allocation4]
    $region21: #{tpu_custom_call.1} parent=1 // pred_fallthru
      _
    // Predicated region
    $region22: #{tpu_custom_call.1} parent=1 // pred_check
      _
    $region23: #{tpu_custom_call.1} parent=1 // pred_check_branch
      %134 = sbr.rel (0) target = $region25
    $region24: #{tpu_custom_call.1} parent=1 // pred_region
      %135 = dma.done [#allocation4], 128
    $region25: #{tpu_custom_call.1} parent=1 // pred_fallthru
      _
    %136 = vsyncpa [#allocation3], 1
    %137 = vsyncpa [#allocation6], 1
    %138 = vsyncpa [#allocation4], 1

</llo_original>
